<compile_context>
chip_gen: v7x
topology: tpu7x:2x2x1
jax: 0.10.0
libtpu: 0.0.40
codegen_flags: <defaults>
</compile_context>

<pallas_src>
import functools

import jax
import jax.numpy as jnp
from jax import lax
from jax.experimental import pallas as pl
from jax.experimental.pallas import tpu as pltpu


def _round_up(v: int, m: int) -> int:
    return (v + m - 1) // m * m


def _vmem_limit(block_bytes: int) -> int:
    # double-buffered pipeline blocks + headroom, clamped (v7x has 64 MiB / TC).
    need = 2 * block_bytes + (4 << 20)
    return int(min(max(need, 16 << 20), 64 << 20))


# ---------------------------------------------------------------------------
# Kernel 1: fuse masks into the adjacency + per-row normalization scale d.
# ---------------------------------------------------------------------------
def _prep_kernel(adj_ref, m1_ref, m2_ref, a_out_ref, d_out_ref):
    # adj = adj * mask1 * mask2  (single fused pass over the row tile, f32)
    a = adj_ref[...] * m1_ref[...] * m2_ref[...]                 # (TK, N)
    # degree of (A + I): rowsum + 1.  No identity matrix is materialized.
    rs = jnp.sum(a, axis=1, keepdims=True) + 1.0                 # (TK, 1)
    d_out_ref[...] = jnp.where(rs > 0.0, lax.rsqrt(rs), 0.0)     # D^-1/2 diag
    a_out_ref[...] = a.astype(a_out_ref.dtype)                   # f32 or bf16


# ---------------------------------------------------------------------------
# Kernel 2: one GCN layer,  out = act(W @ (D (A+I)^T D x))  in (F, N) layout.
# ---------------------------------------------------------------------------
def _gcn_layer_kernel(a_ref, x_full_ref, d_full_ref, x_j_ref, d_j_ref, w_ref,
                      o_ref, *, apply_relu: bool, compute_dtype):
    # y = d * x over ALL source nodes (lane-dense (F_in, N) elementwise).
    y_full = x_full_ref[...] * d_full_ref[...]
    # z_j = y @ A[:, j-block] == (A^T (d*x))^T restricted to this column tile.
    # Standard [F,K]x[K,TN] contraction: no transposed read of the NxN operand.
    z_j = lax.dot_general(y_full.astype(compute_dtype), a_ref[...],
                          (((1,), (0,)), ((), ())),
                          preferred_element_type=jnp.float32)     # (F_in, TN)
    # Fold the self-loop (+I) and the left D scaling:  h = d * (z + d*x).
    y_j = x_j_ref[...] * d_j_ref[...]
    h_j = d_j_ref[...] * (z_j + y_j)                              # (F_in, TN)
    # nn.Linear(bias=False): (x @ W^T)^T == W @ h; N stays the MXU free dim.
    g_j = lax.dot_general(w_ref[...], h_j, (((1,), (0,)), ((), ())),
                          preferred_element_type=jnp.float32)     # (F_out, TN)
    if apply_relu:
        g_j = jnp.maximum(g_j, 0.0)
    # TODO(synk): training-mode dropout(p=0.5) would use pltpu.prng_seed/prng_random_bits.
    o_ref[...] = g_j.astype(o_ref.dtype)


def net_gcn_forward(x, adj, mask1, mask2, weights, *, val_test=True,
                    compute_dtype=jnp.float32, node_tile=256):
    """net_gcn forward (eval / val_test path).

    x: (N, F_in); adj, mask1, mask2: (N, N); weights: list of (F_out, F_in).
    compute_dtype: dtype of the streamed adjacency / d*x matmul operands
                   (f32 or bf16; accumulation always f32).
    """
    del val_test  # dropout is identity on the eval / val_test path
    n = adj.shape[0]
    layer_num = len(weights)
    f32 = jnp.float32

    node_tile = max(128, int(node_tile))
    assert node_tile % 128 == 0, "node_tile must be a multiple of 128"
    node_tile = min(node_tile, _round_up(n, 128))
    n_pad = _round_up(n, node_tile)
    num_tiles = n_pad // node_tile
    a_isz = jnp.dtype(compute_dtype).itemsize

    # --- pad node axis to a lane-aligned multiple of the tile ----------------
    pad = n_pad - n
    adj_p = jnp.pad(adj.astype(f32), ((0, pad), (0, pad)))
    m1_p = jnp.pad(mask1.astype(f32), ((0, pad), (0, pad)))
    m2_p = jnp.pad(mask2.astype(f32), ((0, pad), (0, pad)))
    # features in transposed (F, N) layout: N on the lane axis
    h = jnp.pad(x.astype(f32).T, ((0, 0), (0, pad)))

    # --- kernel 1: masked adjacency + degree vector (row tiles, parallel) ----
    prep_block_bytes = (3 * node_tile * n_pad * 4
                        + node_tile * n_pad * a_isz + node_tile * 4)
    a_masked, d_col = pl.pallas_call(
        _prep_kernel,
        grid=(num_tiles,),
        in_specs=[pl.BlockSpec((node_tile, n_pad), lambda i: (i, 0))] * 3,
        out_specs=[pl.BlockSpec((node_tile, n_pad), lambda i: (i, 0)),
                   pl.BlockSpec((node_tile, 1), lambda i: (i, 0))],
        out_shape=[jax.ShapeDtypeStruct((n_pad, n_pad), compute_dtype),
                   jax.ShapeDtypeStruct((n_pad, 1), f32)],
        compiler_params=pltpu.CompilerParams(
            dimension_semantics=("parallel",),
            vmem_limit_bytes=_vmem_limit(prep_block_bytes)),
    )(adj_p, m1_p, m2_p)
    d_row = d_col.reshape(1, n_pad)                 # lane-oriented D^-1/2

    # --- kernel 2: one call per GCN layer (column tiles of A, parallel) ------
    for ln, w in enumerate(weights):
        f_out, f_in = w.shape
        assert h.shape[0] == f_in, "weight/feature dim mismatch"
        layer_block_bytes = (n_pad * node_tile * a_isz     # A column tile
                             + f_in * n_pad * 4            # x (resident)
                             + n_pad * 4                   # d (resident)
                             + f_in * node_tile * 4        # x column tile
                             + node_tile * 4               # d column tile
                             + f_out * f_in * 4            # W
                             + f_out * node_tile * 4)      # output tile
        kernel = functools.partial(_gcn_layer_kernel,
                                   apply_relu=(ln < layer_num - 1),
                                   compute_dtype=compute_dtype)
        h = pl.pallas_call(
            kernel,
            grid=(num_tiles,),
            in_specs=[
                pl.BlockSpec((n_pad, node_tile), lambda j: (0, j)),  # A cols
                pl.BlockSpec((f_in, n_pad), lambda j: (0, 0)),       # x resident
                pl.BlockSpec((1, n_pad), lambda j: (0, 0)),          # d resident
                pl.BlockSpec((f_in, node_tile), lambda j: (0, j)),   # x cols j
                pl.BlockSpec((1, node_tile), lambda j: (0, j)),      # d cols j
                pl.BlockSpec((f_out, f_in), lambda j: (0, 0)),       # W
            ],
            out_specs=pl.BlockSpec((f_out, node_tile), lambda j: (0, j)),
            out_shape=jax.ShapeDtypeStruct((f_out, n_pad), f32),
            compiler_params=pltpu.CompilerParams(
                dimension_semantics=("parallel",),
                vmem_limit_bytes=_vmem_limit(layer_block_bytes)),
        )(a_masked, h, d_row, h, d_row, w.astype(f32))

    return h[:, :n].T                                # back to (N, F_out_last)


def _reference_forward(x, adj, mask1, mask2, weights):
    """Pure-JAX reference mirroring the PyTorch code."""
    a = adj * mask1 * mask2
    a = a + jnp.eye(a.shape[0], dtype=a.dtype)
    rowsum = a.sum(axis=1)
    d = jnp.where(rowsum > 0.0, rowsum ** -0.5, 0.0)
    d_mat = jnp.diag(d)
    a_norm = (a @ d_mat).T @ d_mat
    h = x
    for ln, w in enumerate(weights):
        h = a_norm @ h
        h = h @ w.T
        if ln < len(weights) - 1:
            h = jnp.maximum(h, 0.0)
    return h


if __name__ == "__main__":
    key = jax.random.PRNGKey(0)
    k_adj, k_x, k_w1, k_w2 = jax.random.split(key, 4)

    N = 200                       # non-multiple of 128 -> exercises padding
    embedding_dim = [16, 32, 8]   # net_gcn(embedding_dim, adj): 2 linear layers

    # deterministic synthetic symmetric adjacency (0/1, self-loops excluded)
    raw = jax.random.uniform(k_adj, (N, N))
    adj = (raw + raw.T > 1.4).astype(jnp.float32)
    adj = adj * (1.0 - jnp.eye(N, dtype=jnp.float32))

    # masks = nonzero pattern of adj (generate_adj_mask)
    mask1 = (adj != 0).astype(jnp.float32)
    mask2 = (adj != 0).astype(jnp.float32)

    # node features and per-layer Linear weights (out, in), no bias
    x = jax.random.normal(k_x, (N, embedding_dim[0]), dtype=jnp.float32)
    w1 = 0.1 * jax.random.normal(k_w1, (embedding_dim[1], embedding_dim[0]),
                                 dtype=jnp.float32)
    w2 = 0.1 * jax.random.normal(k_w2, (embedding_dim[2], embedding_dim[1]),
                                 dtype=jnp.float32)
    weights = [w1, w2]

    ref = _reference_forward(x, adj, mask1, mask2, weights)

    # f32 path (exact semantics)
    out = net_gcn_forward(x, adj, mask1, mask2, weights, node_tile=128)
    out = jax.block_until_ready(out)
    assert out.shape == (N, embedding_dim[-1])
    assert jnp.allclose(out, ref, atol=1e-4, rtol=1e-4), "f32 mismatch vs reference"

    # bf16-streamed adjacency path (f32 accumulation) — looser tolerance
    out_bf16 = net_gcn_forward(x, adj, mask1, mask2, weights, node_tile=128,
                               compute_dtype=jnp.bfloat16)
    out_bf16 = jax.block_until_ready(out_bf16)
    assert jnp.allclose(out_bf16, ref, atol=3e-2, rtol=3e-2), "bf16 mismatch vs reference"

    print("KERNEL_OK")
</pallas_src>

<mosaic_0001>
module attributes {stable_mosaic.version = 11 : i64} {
  func.func @_prep_kernel(%arg0: i32, %arg1: memref<128x256xf32, #tpu.memory_space<vmem>>, %arg2: memref<128x256xf32, #tpu.memory_space<vmem>>, %arg3: memref<128x256xf32, #tpu.memory_space<vmem>>, %arg4: memref<128x256xf32, #tpu.memory_space<vmem>>, %arg5: memref<128x1xf32, #tpu.memory_space<vmem>>) attributes {dimension_semantics = [#tpu.dimension_semantics<parallel>], iteration_bounds = array<i64: 2>, scalar_prefetch = 0 : i64, scratch_operands = 0 : i64, tpu.core_type = #tpu.core_type<tc>, window_params = [{transform_indices = @transform_0, window_bounds = array<i64: 128, 256>}, {transform_indices = @transform_1, window_bounds = array<i64: 128, 256>}, {transform_indices = @transform_2, window_bounds = array<i64: 128, 256>}, {transform_indices = @transform_3, window_bounds = array<i64: 128, 256>}, {transform_indices = @transform_4, window_bounds = array<i64: 128, 1>}]} {
    %c0 = arith.constant 0 : index
    %c0_0 = arith.constant 0 : index
    %0 = vector.load %arg1[%c0, %c0_0] : memref<128x256xf32, #tpu.memory_space<vmem>>, vector<128x256xf32>
    %c0_1 = arith.constant 0 : index
    %c0_2 = arith.constant 0 : index
    %1 = vector.load %arg2[%c0_1, %c0_2] : memref<128x256xf32, #tpu.memory_space<vmem>>, vector<128x256xf32>
    %2 = arith.mulf %0, %1 : vector<128x256xf32>
    %c0_3 = arith.constant 0 : index
    %c0_4 = arith.constant 0 : index
    %3 = vector.load %arg3[%c0_3, %c0_4] : memref<128x256xf32, #tpu.memory_space<vmem>>, vector<128x256xf32>
    %4 = arith.mulf %2, %3 : vector<128x256xf32>
    %cst = arith.constant dense<0.000000e+00> : vector<128xf32>
    %5 = vector.multi_reduction <add>, %4, %cst [1] : vector<128x256xf32> to vector<128xf32>
    %6 = vector.shape_cast %5 : vector<128xf32> to vector<128x1xf32>
    %cst_5 = arith.constant 1.000000e+00 : f32
    %7 = vector.broadcast %cst_5 : f32 to vector<128x1xf32>
    %8 = arith.addf %6, %7 : vector<128x1xf32>
    %cst_6 = arith.constant 0.000000e+00 : f32
    %9 = vector.broadcast %cst_6 : f32 to vector<128x1xf32>
    %10 = arith.cmpf ogt, %8, %9 : vector<128x1xf32>
    %11 = math.rsqrt %8 : vector<128x1xf32>
    %cst_7 = arith.constant 0.000000e+00 : f32
    %12 = vector.broadcast %cst_7 : f32 to vector<128x1xf32>
    %13 = arith.select %10, %11, %12 : vector<128x1xi1>, vector<128x1xf32>
    %c0_8 = arith.constant 0 : index
    %c0_9 = arith.constant 0 : index
    %14 = vector.load %arg5[%c0_8, %c0_9] : memref<128x1xf32, #tpu.memory_space<vmem>>, vector<128x1xf32>
    tpu.vector_store %arg5[%c0_8, %c0_9], %13 {strides = array<i32>} : memref<128x1xf32, #tpu.memory_space<vmem>>, vector<128x1xf32>,
    %c0_10 = arith.constant 0 : index
    %c0_11 = arith.constant 0 : index
    %15 = vector.load %arg4[%c0_10, %c0_11] : memref<128x256xf32, #tpu.memory_space<vmem>>, vector<128x256xf32>
    tpu.vector_store %arg4[%c0_10, %c0_11], %4 {strides = array<i32>} : memref<128x256xf32, #tpu.memory_space<vmem>>, vector<128x256xf32>,
    return
  }
  func.func @transform_0(%arg0: i32) -> (i32, i32) {
    %c0_i32 = arith.constant 0 : i32
    %c0_i32_0 = arith.constant 0 : i32
    return %arg0, %c0_i32 : i32, i32
  }
  func.func @transform_1(%arg0: i32) -> (i32, i32) {
    %c0_i32 = arith.constant 0 : i32
    %c0_i32_0 = arith.constant 0 : i32
    return %arg0, %c0_i32 : i32, i32
  }
  func.func @transform_2(%arg0: i32) -> (i32, i32) {
    %c0_i32 = arith.constant 0 : i32
    %c0_i32_0 = arith.constant 0 : i32
    return %arg0, %c0_i32 : i32, i32
  }
  func.func @transform_3(%arg0: i32) -> (i32, i32) {
    %c0_i32 = arith.constant 0 : i32
    %c0_i32_0 = arith.constant 0 : i32
    return %arg0, %c0_i32 : i32, i32
  }
  func.func @transform_4(%arg0: i32) -> (i32, i32) {
    %c0_i32 = arith.constant 0 : i32
    %c0_i32_0 = arith.constant 0 : i32
    return %arg0, %c0_i32 : i32, i32
  }
}

</mosaic_0001>

<llo_original>
// kernel: tpu_custom_call.1
$region0: #{tpu_custom_call.1}
  #allocation0 [shape = 'u32[]', space=smem, size = 0x4, offset = 0x4, fixed_abs, tag = 'smem constant byte address 0x4 - core index']
  #allocation1 [shape = 'u32[144,128]{1,0:T(1,128)}', space=vmem, size = 0x12000, scoped, tag = 'internal scratch']
  %s0 = inlined_call_operand.hbm [shape: f32[256,256], index: 0, kind: input, shape index: {}]
  %s1 = inlined_call_operand.hbm [shape: f32[256,256], index: 1, kind: input, shape index: {}]
  %s2 = inlined_call_operand.hbm [shape: f32[256,256], index: 2, kind: input, shape index: {}]
  %s3 = inlined_call_operand.hbm [shape: f32[256,256], index: 3, kind: output, shape index: {0}]
  %s4 = inlined_call_operand.vmem [shape: f32[256,1], index: 4, kind: output, shape index: {1}]
  %5 = xla_tuple %s3, %s4
  %s6 = sld [smem:[#allocation0]]
  $region65: #{tpu_custom_call.1} parent=0
    _
  %s8 = ssub.s32 1, %s6
  %s9 = scalar_select 0, %s8, %s6
  $region1: #{tpu_custom_call.1} parent=0
    #allocation2 [shape = 'u8[262144]{0}', space=vmem, size = 0x40000, scoped, tag = 'input window, operand 0']
    #allocation3 [shape = 's32[2]{0}', space=sflag, size = 0x8, scoped, tag = 'scoped memory for tpu_custom_call.1']
    #allocation4 [shape = 's32[2]{0}', space=sflag, size = 0x8, scoped, tag = 'scoped memory for tpu_custom_call.1']
    #allocation5 [shape = 'u8[262144]{0}', space=vmem, size = 0x40000, scoped, tag = 'input window, operand 1']
    #allocation6 [shape = 's32[2]{0}', space=sflag, size = 0x8, scoped, tag = 'scoped memory for tpu_custom_call.1']
    #allocation7 [shape = 'u8[262144]{0}', space=vmem, size = 0x40000, scoped, tag = 'input window, operand 2']
    #allocation8 [shape = 'u8[262144]{0}', space=vmem, size = 0x40000, scoped, tag = 'output window, operand 0']
    %10 = vsyncpa [#allocation3], 0
    %s11 = scalar_lea.sflag [#allocation3], 1
    %12 = vsyncpa %s11, 0
    %13 = vsyncpa [#allocation6], 0
    %s14 = scalar_lea.sflag [#allocation6], 1
    %15 = vsyncpa %s14, 0
    %16 = vsyncpa [#allocation4], 0
    %s17 = scalar_lea.sflag [#allocation4], 1
    %18 = vsyncpa %s17, 0
    loop: start=0, step=1, limit=4
    $region2: #{tpu_custom_call.1} parent=1 // loop_pre_header
      _
    $region3: #{tpu_custom_call.1} parent=1 // loop_header
      %s20 = sphi 0, %s24
      %p21 = scmp.ge.s32.totalorder %s20, 4
      %s30 = sphi 0, %s32
      %s33 = sphi 0, %s30
      %s34 = sphi 0, %s33
      %s50 = sphi 0, %s34
      %s56 = sphi 0, %s58
      %s59 = sphi 0, %s56
      %s60 = sphi 0, %s59
      %s76 = sphi 0, %s60
      %s82 = sphi 0, %s84
      %s85 = sphi 0, %s82
      %s86 = sphi 0, %s85
      %s102 = sphi 0, %s86
      %s108 = sphi 0, %s110
      %s111 = sphi 0, %s108
      %s112 = sphi 0, %s111
      %s128 = sphi 0, %s112
      %s134 = sphi 0, %s136
      %s137 = sphi 0, %s134
      %s138 = sphi 0, %s137
      %s154 = sphi 0, %s138
    $region4: #{tpu_custom_call.1} parent=1 // loop_header_branch
      %23 = sbr.rel (%p21) target = $region8
    $region5: #{tpu_custom_call.1} parent=1 // loop_body
      %s25 = ssub.s32 %s20, 1
      %s26 = ssub.s32 %s20, 2
      %s27 = sadd.s32 %s20, 1
      %s28 = ssub.s32 %s20, %s27
      %p29 = scmp.eq.s32.totalorder %s28, 0
      %s31 = sadd.s32 %s30, 1
      %s32 = scalar_select %p29, %s30, %s31
      %p35 = pneg %p29
      %p36 = scmp.eq.s32.totalorder %s20, 1
      %p37 = por %p35, %p36
      %p38 = scmp.ne.s32.totalorder %s30, %s33
      %p39 = scmp.eq.s32.totalorder %s20, 0
      %p40 = por %p38, %p39
      %p41 = scmp.ne.s32.totalorder %s30, %s33
      %p42 = scmp.eq.s32.totalorder %s25, 1
      %p43 = por %p41, %p42
      %p44 = scmp.ne.s32.totalorder %s33, %s34
      %p45 = scmp.eq.s32.totalorder %s25, 0
      %p46 = por %p44, %p45
      %p47 = scmp.ne.s32.totalorder %s33, %s34
      %p48 = scmp.eq.s32.totalorder %s26, 1
      %p49 = por %p47, %p48
      %p51 = scmp.ne.s32.totalorder %s34, %s50
      %p52 = scmp.eq.s32.totalorder %s26, 0
      %p53 = por %p51, %p52
      %s54 = ssub.s32 %s20, %s27
      %p55 = scmp.eq.s32.totalorder %s54, 0
      %s57 = sadd.s32 %s56, 1
      %s58 = scalar_select %p55, %s56, %s57
      %p61 = pneg %p55
      %p62 = scmp.eq.s32.totalorder %s20, 1
      %p63 = por %p61, %p62
      %p64 = scmp.ne.s32.totalorder %s56, %s59
      %p65 = scmp.eq.s32.totalorder %s20, 0
      %p66 = por %p64, %p65
      %p67 = scmp.ne.s32.totalorder %s56, %s59
      %p68 = scmp.eq.s32.totalorder %s25, 1
      %p69 = por %p67, %p68
      %p70 = scmp.ne.s32.totalorder %s59, %s60
      %p71 = scmp.eq.s32.totalorder %s25, 0
      %p72 = por %p70, %p71
      %p73 = scmp.ne.s32.totalorder %s59, %s60
      %p74 = scmp.eq.s32.totalorder %s26, 1
      %p75 = por %p73, %p74
      %p77 = scmp.ne.s32.totalorder %s60, %s76
      %p78 = scmp.eq.s32.totalorder %s26, 0
      %p79 = por %p77, %p78
      %s80 = ssub.s32 %s20, %s27
      %p81 = scmp.eq.s32.totalorder %s80, 0
      %s83 = sadd.s32 %s82, 1
      %s84 = scalar_select %p81, %s82, %s83
      %p87 = pneg %p81
      %p88 = scmp.eq.s32.totalorder %s20, 1
      %p89 = por %p87, %p88
      %p90 = scmp.ne.s32.totalorder %s82, %s85
      %p91 = scmp.eq.s32.totalorder %s20, 0
      %p92 = por %p90, %p91
      %p93 = scmp.ne.s32.totalorder %s82, %s85
      %p94 = scmp.eq.s32.totalorder %s25, 1
      %p95 = por %p93, %p94
      %p96 = scmp.ne.s32.totalorder %s85, %s86
      %p97 = scmp.eq.s32.totalorder %s25, 0
      %p98 = por %p96, %p97
      %p99 = scmp.ne.s32.totalorder %s85, %s86
      %p100 = scmp.eq.s32.totalorder %s26, 1
      %p101 = por %p99, %p100
      %p103 = scmp.ne.s32.totalorder %s86, %s102
      %p104 = scmp.eq.s32.totalorder %s26, 0
      %p105 = por %p103, %p104
      %s106 = ssub.s32 %s20, %s27
      %p107 = scmp.eq.s32.totalorder %s106, 0
      %s109 = sadd.s32 %s108, 1
      %s110 = scalar_select %p107, %s108, %s109
      %p113 = pneg %p107
      %p114 = scmp.eq.s32.totalorder %s20, 1
      %p115 = por %p113, %p114
      %p116 = scmp.ne.s32.totalorder %s108, %s111
      %p117 = scmp.eq.s32.totalorder %s20, 0
      %p118 = por %p116, %p117
      %p119 = scmp.ne.s32.totalorder %s108, %s111
      %p120 = scmp.eq.s32.totalorder %s25, 1
      %p121 = por %p119, %p120
      %p122 = scmp.ne.s32.totalorder %s111, %s112
      %p123 = scmp.eq.s32.totalorder %s25, 0
      %p124 = por %p122, %p123
      %p125 = scmp.ne.s32.totalorder %s111, %s112
      %p126 = scmp.eq.s32.totalorder %s26, 1
      %p127 = por %p125, %p126
      %p129 = scmp.ne.s32.totalorder %s112, %s128
      %p130 = scmp.eq.s32.totalorder %s26, 0
      %p131 = por %p129, %p130
      %s132 = ssub.s32 %s20, %s27
      %p133 = scmp.eq.s32.totalorder %s132, 0
      %s135 = sadd.s32 %s134, 1
      %s136 = scalar_select %p133, %s134, %s135
      %p139 = pneg %p133
      %p140 = scmp.eq.s32.totalorder %s20, 1
      %p141 = por %p139, %p140
      %p142 = scmp.ne.s32.totalorder %s134, %s137
      %p143 = scmp.eq.s32.totalorder %s20, 0
      %p144 = por %p142, %p143
      %p145 = scmp.ne.s32.totalorder %s134, %s137
      %p146 = scmp.eq.s32.totalorder %s25, 1
      %p147 = por %p145, %p146
      %p148 = scmp.ne.s32.totalorder %s137, %s138
      %p149 = scmp.eq.s32.totalorder %s25, 0
      %p150 = por %p148, %p149
      %p151 = scmp.ne.s32.totalorder %s137, %s138
      %p152 = scmp.eq.s32.totalorder %s26, 1
      %p153 = por %p151, %p152
      %p155 = scmp.ne.s32.totalorder %s138, %s154
      %p156 = scmp.eq.s32.totalorder %s26, 0
      %p157 = por %p155, %p156
      %p158 = scmp.le.s32.totalorder 1, %s20
      %p159 = scmp.lt.s32.totalorder %s20, 3
      %p160 = pnand %p158, %p159
      %p161 = pneg %p160
      // Predicated region
      $region9: #{tpu_custom_call.1} parent=5 // pred_check
        _
      $region10: #{tpu_custom_call.1} parent=5 // pred_check_branch
        %163 = sbr.rel (%p160) target = $region12
      $region11: #{tpu_custom_call.1} parent=5 // pred_region
        %s164 = ssub.s32 %s20, 1
      $region12: #{tpu_custom_call.1} parent=5 // pred_fallthru
        _
      %p165 = scmp.lt.s32.totalorder %s20, 2
      // Predicated region
      $region13: #{tpu_custom_call.1} parent=5 // pred_check
        %p166 = pneg %p165
      $region14: #{tpu_custom_call.1} parent=5 // pred_check_branch
        %168 = sbr.rel (%p166) target = $region16
      $region15: #{tpu_custom_call.1} parent=5 // pred_region
        // Predicated region
        $region17: #{tpu_custom_call.1} parent=15 // pred_check
          %p169 = pneg %p40
        $region18: #{tpu_custom_call.1} parent=15 // pred_check_branch
          %171 = sbr.rel (%p169) target = $region20
        $region19: #{tpu_custom_call.1} parent=15 // pred_region
          %s172 = sand.u32 %s30, 1
          %s173 = scalar_lea.sflag [#allocation3], %s172
          %s174 = sand.u32 %s30, 1
          %s175 = smul.addr %s174, 256
          %s176 = scalar_lea.vmem [#allocation2], %s175
          %s177 = smul.u32 16, %s20
          %s179 = ssub.s32 4096, 4096
          %180 = vsyncadd %s173, %s179
          %s181 = smul.addr %s177, 2
          %s182 = smul.addr %s181, 128
          %s183 = scalar_lea.hbm %s0, %s182
          %s184 = sshll.u32 %s176, 4
          %s185 = int_to_ptr.vmem [resolvable:$true] %s184
          %190 = dma.hbm_to_vmem [thread:$0]  %s183, 4096, %s185, %s173, 256, 256, 16
        $region20: #{tpu_custom_call.1} parent=15 // pred_fallthru
          _
        // Predicated region
        $region21: #{tpu_custom_call.1} parent=15 // pred_check
          %p191 = pneg %p66
        $region22: #{tpu_custom_call.1} parent=15 // pred_check_branch
          %193 = sbr.rel (%p191) target = $region24
        $region23: #{tpu_custom_call.1} parent=15 // pred_region
          %s194 = sand.u32 %s20, 1
          %s195 = scalar_lea.sflag [#allocation6], %s194
          %s196 = sand.u32 %s56, 1
          %s197 = smul.addr %s196, 256
          %s198 = scalar_lea.vmem [#allocation5], %s197
          %s199 = smul.u32 16, %s20
          %s201 = ssub.s32 4096, 4096
          %202 = vsyncadd %s195, %s201
          %s203 = smul.addr %s199, 2
          %s204 = smul.addr %s203, 128
          %s205 = scalar_lea.hbm %s1, %s204
          %s206 = sshll.u32 %s198, 4
          %s207 = int_to_ptr.vmem [resolvable:$true] %s206
          %212 = dma.hbm_to_vmem [thread:$0]  %s205, 4096, %s207, %s195, 256, 256, 16
        $region24: #{tpu_custom_call.1} parent=15 // pred_fallthru
          _
        // Predicated region
        $region25: #{tpu_custom_call.1} parent=15 // pred_check
          %p213 = pneg %p92
        $region26: #{tpu_custom_call.1} parent=15 // pred_check_branch
          %215 = sbr.rel (%p213) target = $region28
        $region27: #{tpu_custom_call.1} parent=15 // pred_region
          %s216 = sand.u32 %s20, 1
          %s217 = scalar_lea.sflag [#allocation6], %s216
          %s218 = sand.u32 %s82, 1
          %s219 = smul.addr %s218, 256
          %s220 = scalar_lea.vmem [#allocation7], %s219
          %s221 = smul.u32 16, %s20
          %s223 = ssub.s32 4096, 4096
          %224 = vsyncadd %s217, %s223
          %s225 = smul.addr %s221, 2
          %s226 = smul.addr %s225, 128
          %s227 = scalar_lea.hbm %s2, %s226
          %s228 = sshll.u32 %s220, 4
          %s229 = int_to_ptr.vmem [resolvable:$true] %s228
          %234 = dma.hbm_to_vmem [thread:$0]  %s227, 4096, %s229, %s217, 256, 256, 16
        $region28: #{tpu_custom_call.1} parent=15 // pred_fallthru
          _
      $region16: #{tpu_custom_call.1} parent=5 // pred_fallthru
        _
      %p235 = scmp.le.s32.totalorder 1, %s20
      %p236 = scmp.lt.s32.totalorder %s20, 3
      %p237 = pnand %p235, %p236
      %p238 = pneg %p237
      // Predicated region
      $region29: #{tpu_custom_call.1} parent=5 // pred_check
        _
      $region30: #{tpu_custom_call.1} parent=5 // pred_check_branch
        %240 = sbr.rel (%p237) target = $region32
      $region31: #{tpu_custom_call.1} parent=5 // pred_region
        %s241 = ssub.s32 %s20, 1
        %s242 = sand.u32 %s33, 1
        %s243 = scalar_lea.sflag [#allocation3], %s242
        %s244 = sand.u32 %s33, 1
        %s245 = smul.addr %s244, 256
        %s246 = scalar_lea.vmem [#allocation2], %s245
        // Predicated region
        $region33: #{tpu_custom_call.1} parent=31 // pred_check
          %p247 = pneg %p46
        $region34: #{tpu_custom_call.1} parent=31 // pred_check_branch
          %249 = sbr.rel (%p247) target = $region36
        $region35: #{tpu_custom_call.1} parent=31 // pred_region
          %250 = dma.done %s243, 4096
        $region36: #{tpu_custom_call.1} parent=31 // pred_fallthru
          _
        %s251 = sand.u32 %s25, 1
        %s252 = scalar_lea.sflag [#allocation6], %s251
        %s253 = sand.u32 %s59, 1
        %s254 = smul.addr %s253, 256
        %s255 = scalar_lea.vmem [#allocation5], %s254
        // Predicated region
        $region37: #{tpu_custom_call.1} parent=31 // pred_check
          %p256 = pneg %p72
        $region38: #{tpu_custom_call.1} parent=31 // pred_check_branch
          %258 = sbr.rel (%p256) target = $region40
        $region39: #{tpu_custom_call.1} parent=31 // pred_region
          %259 = dma.done %s252, 4096
        $region40: #{tpu_custom_call.1} parent=31 // pred_fallthru
          _
        %s260 = sand.u32 %s25, 1
        %s261 = scalar_lea.sflag [#allocation6], %s260
        %s262 = sand.u32 %s85, 1
        %s263 = smul.addr %s262, 256
        %s264 = scalar_lea.vmem [#allocation7], %s263
        // Predicated region
        $region41: #{tpu_custom_call.1} parent=31 // pred_check
          %p265 = pneg %p98
        $region42: #{tpu_custom_call.1} parent=31 // pred_check_branch
          %267 = sbr.rel (%p265) target = $region44
        $region43: #{tpu_custom_call.1} parent=31 // pred_region
          %268 = dma.done %s261, 4096
        $region44: #{tpu_custom_call.1} parent=31 // pred_fallthru
          _
        %s269 = sand.u32 %s33, 1
        %s270 = scalar_lea.sflag [#allocation3], %s269
        %s271 = sand.u32 %s33, 1
        %s272 = smul.addr %s271, 256
        %s273 = scalar_lea.vmem [#allocation2], %s272
        %p274 = pneg %p46
        %p275 = pneg %p43
        %s276 = sand.u32 %s25, 1
        %s277 = scalar_lea.sflag [#allocation6], %s276
        %s278 = sand.u32 %s59, 1
        %s279 = smul.addr %s278, 256
        %s280 = scalar_lea.vmem [#allocation5], %s279
        %p281 = pneg %p72
        %p282 = pneg %p69
        %s283 = sand.u32 %s25, 1
        %s284 = scalar_lea.sflag [#allocation6], %s283
        %s285 = sand.u32 %s85, 1
        %s286 = smul.addr %s285, 256
        %s287 = scalar_lea.vmem [#allocation7], %s286
        %p288 = pneg %p98
        %p289 = pneg %p95
        %p290 = pneg %p124
        %p291 = pneg %p121
        %s292 = sand.u32 %s111, 1
        %s293 = scalar_lea.sflag [#allocation4], %s292
        %s294 = sand.u32 %s111, 1
        %s295 = smul.addr %s294, 256
        %s296 = scalar_lea.vmem [#allocation8], %s295
        %p297 = pneg %p150
        %p298 = pneg %p147
        %s299 = smul.u32 16, %s25
        %p300 = scmp.lt.s32.totalorder %s299, 31
        %s301 = scalar_select %p300, %s299, 31
        %s302 = smul.addr %s301, 8
        %s303 = scalar_lea.vmem %s4, %s302
        %s304 = smul.u32 16, %s25
        %s305 = smul.u32 16, %s25
        %s306 = smul.u32 16, %s25
        %s307 = smul.u32 16, %s25
        %s308 = smul.u32 16, %s25
        %p309 = scmp.lt.s32.totalorder %s308, 31
        %s310 = scalar_select %p309, %s308, 31
        %s311 = smul.addr %s310, 8
        %s312 = scalar_lea.vmem %s4, %s311
        %s313 = smul.u32 16, %s25
        %v314 = vld [vmem:[%s246] sm:$0xff]
        %v315 = vld [vmem:[%s246 + $0x8] sm:$0xff]
        %v316 = vld [vmem:[%s246 + $0x10] sm:$0xff]
        %v317 = vld [vmem:[%s246 + $0x18] sm:$0xff]
        %v318 = vld [vmem:[%s246 + $0x20] sm:$0xff]
        %v319 = vld [vmem:[%s246 + $0x28] sm:$0xff]
        %v320 = vld [vmem:[%s246 + $0x30] sm:$0xff]
        %v321 = vld [vmem:[%s246 + $0x38] sm:$0xff]
        %v322 = vld [vmem:[%s246 + $0x40] sm:$0xff]
        %v323 = vld [vmem:[%s246 + $0x48] sm:$0xff]
        %v324 = vld [vmem:[%s246 + $0x50] sm:$0xff]
        %v325 = vld [vmem:[%s246 + $0x58] sm:$0xff]
        %v326 = vld [vmem:[%s246 + $0x60] sm:$0xff]
        %v327 = vld [vmem:[%s246 + $0x68] sm:$0xff]
        %v328 = vld [vmem:[%s246 + $0x70] sm:$0xff]
        %v329 = vld [vmem:[%s246 + $0x78] sm:$0xff]
        %v330 = vld [vmem:[%s246 + $0x80] sm:$0xff]
        %v331 = vld [vmem:[%s246 + $0x88] sm:$0xff]
        %v332 = vld [vmem:[%s246 + $0x90] sm:$0xff]
        %v333 = vld [vmem:[%s246 + $0x98] sm:$0xff]
        %v334 = vld [vmem:[%s246 + $0xa0] sm:$0xff]
        %v335 = vld [vmem:[%s246 + $0xa8] sm:$0xff]
        %v336 = vld [vmem:[%s246 + $0xb0] sm:$0xff]
        %v337 = vld [vmem:[%s246 + $0xb8] sm:$0xff]
        %v338 = vld [vmem:[%s246 + $0xc0] sm:$0xff]
        %v339 = vld [vmem:[%s246 + $0xc8] sm:$0xff]
        %v340 = vld [vmem:[%s246 + $0xd0] sm:$0xff]
        %v341 = vld [vmem:[%s246 + $0xd8] sm:$0xff]
        %v342 = vld [vmem:[%s246 + $0xe0] sm:$0xff]
        %v343 = vld [vmem:[%s246 + $0xe8] sm:$0xff]
        %v344 = vld [vmem:[%s246 + $0xf0] sm:$0xff]
        %v345 = vld [vmem:[%s246 + $0xf8] sm:$0xff]
        %v346 = vld [vmem:[%s255] sm:$0xff]
        %v347 = vld [vmem:[%s255 + $0x8] sm:$0xff]
        %v348 = vld [vmem:[%s255 + $0x10] sm:$0xff]
        %v349 = vld [vmem:[%s255 + $0x18] sm:$0xff]
        %v350 = vld [vmem:[%s255 + $0x20] sm:$0xff]
        %v351 = vld [vmem:[%s255 + $0x28] sm:$0xff]
        %v352 = vld [vmem:[%s255 + $0x30] sm:$0xff]
        %v353 = vld [vmem:[%s255 + $0x38] sm:$0xff]
        %v354 = vld [vmem:[%s255 + $0x40] sm:$0xff]
        %v355 = vld [vmem:[%s255 + $0x48] sm:$0xff]
        %v356 = vld [vmem:[%s255 + $0x50] sm:$0xff]
        %v357 = vld [vmem:[%s255 + $0x58] sm:$0xff]
        %v358 = vld [vmem:[%s255 + $0x60] sm:$0xff]
        %v359 = vld [vmem:[%s255 + $0x68] sm:$0xff]
        %v360 = vld [vmem:[%s255 + $0x70] sm:$0xff]
        %v361 = vld [vmem:[%s255 + $0x78] sm:$0xff]
        %v362 = vld [vmem:[%s255 + $0x80] sm:$0xff]
        %v363 = vld [vmem:[%s255 + $0x88] sm:$0xff]
        %v364 = vld [vmem:[%s255 + $0x90] sm:$0xff]
        %v365 = vld [vmem:[%s255 + $0x98] sm:$0xff]
        %v366 = vld [vmem:[%s255 + $0xa0] sm:$0xff]
        %v367 = vld [vmem:[%s255 + $0xa8] sm:$0xff]
        %v368 = vld [vmem:[%s255 + $0xb0] sm:$0xff]
        %v369 = vld [vmem:[%s255 + $0xb8] sm:$0xff]
        %v370 = vld [vmem:[%s255 + $0xc0] sm:$0xff]
        %v371 = vld [vmem:[%s255 + $0xc8] sm:$0xff]
        %v372 = vld [vmem:[%s255 + $0xd0] sm:$0xff]
        %v373 = vld [vmem:[%s255 + $0xd8] sm:$0xff]
        %v374 = vld [vmem:[%s255 + $0xe0] sm:$0xff]
        %v375 = vld [vmem:[%s255 + $0xe8] sm:$0xff]
        %v376 = vld [vmem:[%s255 + $0xf0] sm:$0xff]
        %v377 = vld [vmem:[%s255 + $0xf8] sm:$0xff]
        %v378 = vmul.f32 %v314, %v346
        %v379 = vmul.f32 %v315, %v347
        %v380 = vmul.f32 %v316, %v348
        %v381 = vmul.f32 %v317, %v349
        %v382 = vmul.f32 %v318, %v350
        %v383 = vmul.f32 %v319, %v351
        %v384 = vmul.f32 %v320, %v352
        %v385 = vmul.f32 %v321, %v353
        %v386 = vmul.f32 %v322, %v354
        %v387 = vmul.f32 %v323, %v355
        %v388 = vmul.f32 %v324, %v356
        %v389 = vmul.f32 %v325, %v357
        %v390 = vmul.f32 %v326, %v358
        %v391 = vmul.f32 %v327, %v359
        %v392 = vmul.f32 %v328, %v360
        %v393 = vmul.f32 %v329, %v361
        %v394 = vmul.f32 %v330, %v362
        %v395 = vmul.f32 %v331, %v363
        %v396 = vmul.f32 %v332, %v364
        %v397 = vmul.f32 %v333, %v365
        %v398 = vmul.f32 %v334, %v366
        %v399 = vmul.f32 %v335, %v367
        %v400 = vmul.f32 %v336, %v368
        %v401 = vmul.f32 %v337, %v369
        %v402 = vmul.f32 %v338, %v370
        %v403 = vmul.f32 %v339, %v371
        %v404 = vmul.f32 %v340, %v372
        %v405 = vmul.f32 %v341, %v373
        %v406 = vmul.f32 %v342, %v374
        %v407 = vmul.f32 %v343, %v375
        %v408 = vmul.f32 %v344, %v376
        %v409 = vmul.f32 %v345, %v377
        %v410 = vld [vmem:[%s264] sm:$0xff]
        %v411 = vld [vmem:[%s264 + $0x8] sm:$0xff]
        %v412 = vld [vmem:[%s264 + $0x10] sm:$0xff]
        %v413 = vld [vmem:[%s264 + $0x18] sm:$0xff]
        %v414 = vld [vmem:[%s264 + $0x20] sm:$0xff]
        %v415 = vld [vmem:[%s264 + $0x28] sm:$0xff]
        %v416 = vld [vmem:[%s264 + $0x30] sm:$0xff]
        %v417 = vld [vmem:[%s264 + $0x38] sm:$0xff]
        %v418 = vld [vmem:[%s264 + $0x40] sm:$0xff]
        %v419 = vld [vmem:[%s264 + $0x48] sm:$0xff]
        %v420 = vld [vmem:[%s264 + $0x50] sm:$0xff]
        %v421 = vld [vmem:[%s264 + $0x58] sm:$0xff]
        %v422 = vld [vmem:[%s264 + $0x60] sm:$0xff]
        %v423 = vld [vmem:[%s264 + $0x68] sm:$0xff]
        %v424 = vld [vmem:[%s264 + $0x70] sm:$0xff]
        %v425 = vld [vmem:[%s264 + $0x78] sm:$0xff]
        %v426 = vld [vmem:[%s264 + $0x80] sm:$0xff]
        %v427 = vld [vmem:[%s264 + $0x88] sm:$0xff]
        %v428 = vld [vmem:[%s264 + $0x90] sm:$0xff]
        %v429 = vld [vmem:[%s264 + $0x98] sm:$0xff]
        %v430 = vld [vmem:[%s264 + $0xa0] sm:$0xff]
        %v431 = vld [vmem:[%s264 + $0xa8] sm:$0xff]
        %v432 = vld [vmem:[%s264 + $0xb0] sm:$0xff]
        %v433 = vld [vmem:[%s264 + $0xb8] sm:$0xff]
        %v434 = vld [vmem:[%s264 + $0xc0] sm:$0xff]
        %v435 = vld [vmem:[%s264 + $0xc8] sm:$0xff]
        %v436 = vld [vmem:[%s264 + $0xd0] sm:$0xff]
        %v437 = vld [vmem:[%s264 + $0xd8] sm:$0xff]
        %v438 = vld [vmem:[%s264 + $0xe0] sm:$0xff]
        %v439 = vld [vmem:[%s264 + $0xe8] sm:$0xff]
        %v440 = vld [vmem:[%s264 + $0xf0] sm:$0xff]
        %v441 = vld [vmem:[%s264 + $0xf8] sm:$0xff]
        %v442 = vmul.f32 %v378, %v410
        %v443 = vmul.f32 %v379, %v411
        %v444 = vmul.f32 %v380, %v412
        %v445 = vmul.f32 %v381, %v413
        %v446 = vmul.f32 %v382, %v414
        %v447 = vmul.f32 %v383, %v415
        %v448 = vmul.f32 %v384, %v416
        %v449 = vmul.f32 %v385, %v417
        %v450 = vmul.f32 %v386, %v418
        %v451 = vmul.f32 %v387, %v419
        %v452 = vmul.f32 %v388, %v420
        %v453 = vmul.f32 %v389, %v421
        %v454 = vmul.f32 %v390, %v422
        %v455 = vmul.f32 %v391, %v423
        %v456 = vmul.f32 %v392, %v424
        %v457 = vmul.f32 %v393, %v425
        %v458 = vmul.f32 %v394, %v426
        %v459 = vmul.f32 %v395, %v427
        %v460 = vmul.f32 %v396, %v428
        %v461 = vmul.f32 %v397, %v429
        %v462 = vmul.f32 %v398, %v430
        %v463 = vmul.f32 %v399, %v431
        %v464 = vmul.f32 %v400, %v432
        %v465 = vmul.f32 %v401, %v433
        %v466 = vmul.f32 %v402, %v434
        %v467 = vmul.f32 %v403, %v435
        %v468 = vmul.f32 %v404, %v436
        %v469 = vmul.f32 %v405, %v437
        %v470 = vmul.f32 %v406, %v438
        %v471 = vmul.f32 %v407, %v439
        %v472 = vmul.f32 %v408, %v440
        %v473 = vmul.f32 %v409, %v441
        %v474 = vadd.f32 %v442, %v443
        %475 = vadd.xlane.f32.xlu0 %v474
        %v476 = vpop.xlane.xlu0 %475
        %v477 = vadd.f32 %v444, %v445
        %478 = vadd.xlane.f32.xlu0 %v477
        %v479 = vpop.xlane.xlu0 %478
        %v480 = vadd.f32 %v446, %v447
        %481 = vadd.xlane.f32.xlu0 %v480
        %v482 = vpop.xlane.xlu0 %481
        %v483 = vadd.f32 %v448, %v449
        %484 = vadd.xlane.f32.xlu0 %v483
        %v485 = vpop.xlane.xlu0 %484
        %v486 = vadd.f32 %v450, %v451
        %487 = vadd.xlane.f32.xlu0 %v486
        %v488 = vpop.xlane.xlu0 %487
        %v489 = vadd.f32 %v452, %v453
        %490 = vadd.xlane.f32.xlu0 %v489
        %v491 = vpop.xlane.xlu0 %490
        %v492 = vadd.f32 %v454, %v455
        %493 = vadd.xlane.f32.xlu0 %v492
        %v494 = vpop.xlane.xlu0 %493
        %v495 = vadd.f32 %v456, %v457
        %496 = vadd.xlane.f32.xlu0 %v495
        %v497 = vpop.xlane.xlu0 %496
        %v498 = vadd.f32 %v458, %v459
        %499 = vadd.xlane.f32.xlu0 %v498
        %v500 = vpop.xlane.xlu0 %499
        %v501 = vadd.f32 %v460, %v461
        %502 = vadd.xlane.f32.xlu0 %v501
        %v503 = vpop.xlane.xlu0 %502
        %v504 = vadd.f32 %v462, %v463
        %505 = vadd.xlane.f32.xlu0 %v504
        %v506 = vpop.xlane.xlu0 %505
        %v507 = vadd.f32 %v464, %v465
        %508 = vadd.xlane.f32.xlu0 %v507
        %v509 = vpop.xlane.xlu0 %508
        %v510 = vadd.f32 %v466, %v467
        %511 = vadd.xlane.f32.xlu0 %v510
        %v512 = vpop.xlane.xlu0 %511
        %v513 = vadd.f32 %v468, %v469
        %514 = vadd.xlane.f32.xlu0 %v513
        %v515 = vpop.xlane.xlu0 %514
        %v516 = vadd.f32 %v470, %v471
        %517 = vadd.xlane.f32.xlu0 %v516
        %v518 = vpop.xlane.xlu0 %517
        %v519 = vadd.f32 %v472, %v473
        %520 = vadd.xlane.f32.xlu0 %v519
        %v521 = vpop.xlane.xlu0 %520
        %v522 = vadd.f32 %v476, 1.0
        %v523 = vadd.f32 %v479, 1.0
        %v524 = vadd.f32 %v482, 1.0
        %v525 = vadd.f32 %v485, 1.0
        %v526 = vadd.f32 %v488, 1.0
        %v527 = vadd.f32 %v491, 1.0
        %v528 = vadd.f32 %v494, 1.0
        %v529 = vadd.f32 %v497, 1.0
        %v530 = vadd.f32 %v500, 1.0
        %v531 = vadd.f32 %v503, 1.0
        %v532 = vadd.f32 %v506, 1.0
        %v533 = vadd.f32 %v509, 1.0
        %v534 = vadd.f32 %v512, 1.0
        %v535 = vadd.f32 %v515, 1.0
        %v536 = vadd.f32 %v518, 1.0
        %v537 = vadd.f32 %v521, 1.0
        %vm538 = vcmp.gt.f32.partialorder %v522, 0.0
        %vm539 = vcmp.gt.f32.partialorder %v523, 0.0
        %vm540 = vcmp.gt.f32.partialorder %v524, 0.0
        %vm541 = vcmp.gt.f32.partialorder %v525, 0.0
        %vm542 = vcmp.gt.f32.partialorder %v526, 0.0
        %vm543 = vcmp.gt.f32.partialorder %v527, 0.0
        %vm544 = vcmp.gt.f32.partialorder %v528, 0.0
        %vm545 = vcmp.gt.f32.partialorder %v529, 0.0
        %vm546 = vcmp.gt.f32.partialorder %v530, 0.0
        %vm547 = vcmp.gt.f32.partialorder %v531, 0.0
        %vm548 = vcmp.gt.f32.partialorder %v532, 0.0
        %vm549 = vcmp.gt.f32.partialorder %v533, 0.0
        %vm550 = vcmp.gt.f32.partialorder %v534, 0.0
        %vm551 = vcmp.gt.f32.partialorder %v535, 0.0
        %vm552 = vcmp.gt.f32.partialorder %v536, 0.0
        %vm553 = vcmp.gt.f32.partialorder %v537, 0.0
        %v554 = vrsqrt.pop %v522
        %v555 = vrsqrt.pop %v523
        %v556 = vrsqrt.pop %v524
        %v557 = vrsqrt.pop %v525
        %v558 = vrsqrt.pop %v526
        %v559 = vrsqrt.pop %v527
        %v560 = vrsqrt.pop %v528
        %v561 = vrsqrt.pop %v529
        %v562 = vrsqrt.pop %v530
        %v563 = vrsqrt.pop %v531
        %v564 = vrsqrt.pop %v532
        %v565 = vrsqrt.pop %v533
        %v566 = vrsqrt.pop %v534
        %v567 = vrsqrt.pop %v535
        %v568 = vrsqrt.pop %v536
        %v569 = vrsqrt.pop %v537
        %v570 = vsel %vm538, %v554, 0.0
        %v571 = vsel %vm539, %v555, 0.0
        %v572 = vsel %vm540, %v556, 0.0
        %v573 = vsel %vm541, %v557, 0.0
        %v574 = vsel %vm542, %v558, 0.0
        %v575 = vsel %vm543, %v559, 0.0
        %v576 = vsel %vm544, %v560, 0.0
        %v577 = vsel %vm545, %v561, 0.0
        %v578 = vsel %vm546, %v562, 0.0
        %v579 = vsel %vm547, %v563, 0.0
        %v580 = vsel %vm548, %v564, 0.0
        %v581 = vsel %vm549, %v565, 0.0
        %v582 = vsel %vm550, %v566, 0.0
        %v583 = vsel %vm551, %v567, 0.0
        %v584 = vsel %vm552, %v568, 0.0
        %v585 = vsel %vm553, %v569, 0.0
        %vm586 = vcmask 7168
        %587 = vst.msk [vmem:[%s312] sm:$0xff] %vm586, %v570
        %588 = vst.msk [vmem:[%s312 + $0x8] sm:$0xff] %vm586, %v571
        %589 = vst.msk [vmem:[%s312 + $0x10] sm:$0xff] %vm586, %v572
        %590 = vst.msk [vmem:[%s312 + $0x18] sm:$0xff] %vm586, %v573
        %591 = vst.msk [vmem:[%s312 + $0x20] sm:$0xff] %vm586, %v574
        %592 = vst.msk [vmem:[%s312 + $0x28] sm:$0xff] %vm586, %v575
        %593 = vst.msk [vmem:[%s312 + $0x30] sm:$0xff] %vm586, %v576
        %594 = vst.msk [vmem:[%s312 + $0x38] sm:$0xff] %vm586, %v577
        %595 = vst.msk [vmem:[%s312 + $0x40] sm:$0xff] %vm586, %v578
        %596 = vst.msk [vmem:[%s312 + $0x48] sm:$0xff] %vm586, %v579
        %597 = vst.msk [vmem:[%s312 + $0x50] sm:$0xff] %vm586, %v580
        %598 = vst.msk [vmem:[%s312 + $0x58] sm:$0xff] %vm586, %v581
        %599 = vst.msk [vmem:[%s312 + $0x60] sm:$0xff] %vm586, %v582
        %600 = vst.msk [vmem:[%s312 + $0x68] sm:$0xff] %vm586, %v583
        %601 = vst.msk [vmem:[%s312 + $0x70] sm:$0xff] %vm586, %v584
        %602 = vst.msk [vmem:[%s312 + $0x78] sm:$0xff] %vm586, %v585
        %603 = vst [vmem:[%s296] sm:$0xff] %v442
        %604 = vst [vmem:[%s296 + $0x8] sm:$0xff] %v443
        %605 = vst [vmem:[%s296 + $0x10] sm:$0xff] %v444
        %606 = vst [vmem:[%s296 + $0x18] sm:$0xff] %v445
        %607 = vst [vmem:[%s296 + $0x20] sm:$0xff] %v446
        %608 = vst [vmem:[%s296 + $0x28] sm:$0xff] %v447
        %609 = vst [vmem:[%s296 + $0x30] sm:$0xff] %v448
        %610 = vst [vmem:[%s296 + $0x38] sm:$0xff] %v449
        %611 = vst [vmem:[%s296 + $0x40] sm:$0xff] %v450
        %612 = vst [vmem:[%s296 + $0x48] sm:$0xff] %v451
        %613 = vst [vmem:[%s296 + $0x50] sm:$0xff] %v452
        %614 = vst [vmem:[%s296 + $0x58] sm:$0xff] %v453
        %615 = vst [vmem:[%s296 + $0x60] sm:$0xff] %v454
        %616 = vst [vmem:[%s296 + $0x68] sm:$0xff] %v455
        %617 = vst [vmem:[%s296 + $0x70] sm:$0xff] %v456
        %618 = vst [vmem:[%s296 + $0x78] sm:$0xff] %v457
        %619 = vst [vmem:[%s296 + $0x80] sm:$0xff] %v458
        %620 = vst [vmem:[%s296 + $0x88] sm:$0xff] %v459
        %621 = vst [vmem:[%s296 + $0x90] sm:$0xff] %v460
        %622 = vst [vmem:[%s296 + $0x98] sm:$0xff] %v461
        %623 = vst [vmem:[%s296 + $0xa0] sm:$0xff] %v462
        %624 = vst [vmem:[%s296 + $0xa8] sm:$0xff] %v463
        %625 = vst [vmem:[%s296 + $0xb0] sm:$0xff] %v464
        %626 = vst [vmem:[%s296 + $0xb8] sm:$0xff] %v465
        %627 = vst [vmem:[%s296 + $0xc0] sm:$0xff] %v466
        %628 = vst [vmem:[%s296 + $0xc8] sm:$0xff] %v467
        %629 = vst [vmem:[%s296 + $0xd0] sm:$0xff] %v468
        %630 = vst [vmem:[%s296 + $0xd8] sm:$0xff] %v469
        %631 = vst [vmem:[%s296 + $0xe0] sm:$0xff] %v470
        %632 = vst [vmem:[%s296 + $0xe8] sm:$0xff] %v471
        %633 = vst [vmem:[%s296 + $0xf0] sm:$0xff] %v472
        %634 = vst [vmem:[%s296 + $0xf8] sm:$0xff] %v473
        %s635 = sand.u32 %s111, 1
        %s636 = scalar_lea.sflag [#allocation4], %s635
        %s637 = sand.u32 %s111, 1
        %s638 = smul.addr %s637, 256
        %s639 = scalar_lea.vmem [#allocation8], %s638
        %s640 = smul.u32 16, %s25
        %p641 = scmp.lt.s32.totalorder %s640, 31
        %s642 = scalar_select %p641, %s640, 31
        %s643 = smul.addr %s642, 8
        %s644 = scalar_lea.vmem %s4, %s643
        // Predicated region
        $region45: #{tpu_custom_call.1} parent=31 // pred_check
          %p645 = pneg %p121
        $region46: #{tpu_custom_call.1} parent=31 // pred_check_branch
          %647 = sbr.rel (%p645) target = $region48
        $region47: #{tpu_custom_call.1} parent=31 // pred_region
          %s648 = smul.u32 16, %s25
          %s650 = ssub.s32 4096, 4096
          %651 = vsyncadd %s636, %s650
          %s652 = smul.addr %s648, 2
          %s653 = smul.addr %s652, 128
          %s654 = scalar_lea.hbm %s3, %s653
          %s655 = sshll.u32 %s639, 4
          %s656 = int_to_ptr.vmem [resolvable:$true] %s655
          %661 = dma.vmem_to_hbm [thread:$0]  %s656, 4096, %s654, %s636, 256, 256, 16
        $region48: #{tpu_custom_call.1} parent=31 // pred_fallthru
          _
        // Predicated region
        $region49: #{tpu_custom_call.1} parent=31 // pred_check
          %p662 = pneg %p147
        $region50: #{tpu_custom_call.1} parent=31 // pred_check_branch
          %664 = sbr.rel (%p662) target = $region52
        $region51: #{tpu_custom_call.1} parent=31 // pred_region
          %s665 = smul.u32 16, %s25
        $region52: #{tpu_custom_call.1} parent=31 // pred_fallthru
          _
      $region32: #{tpu_custom_call.1} parent=5 // pred_fallthru
        _
      %p666 = scmp.le.s32.totalorder 2, %s20
      // Predicated region
      $region53: #{tpu_custom_call.1} parent=5 // pred_check
        %p667 = pneg %p666
      $region54: #{tpu_custom_call.1} parent=5 // pred_check_branch
        %669 = sbr.rel (%p667) target = $region56
      $region55: #{tpu_custom_call.1} parent=5 // pred_region
        %s670 = ssub.s32 %s20, 2
        // Predicated region
        $region57: #{tpu_custom_call.1} parent=55 // pred_check
          %p671 = pneg %p127
        $region58: #{tpu_custom_call.1} parent=55 // pred_check_branch
          %673 = sbr.rel (%p671) target = $region60
        $region59: #{tpu_custom_call.1} parent=55 // pred_region
          %s674 = sand.u32 %s112, 1
          %s675 = scalar_lea.sflag [#allocation4], %s674
          %s676 = sand.u32 %s112, 1
          %s677 = smul.addr %s676, 256
          %s678 = scalar_lea.vmem [#allocation8], %s677
          %679 = dma.done %s675, 4096
        $region60: #{tpu_custom_call.1} parent=55 // pred_fallthru
          _
        // Predicated region
        $region61: #{tpu_custom_call.1} parent=55 // pred_check
          %p680 = pneg %p153
        $region62: #{tpu_custom_call.1} parent=55 // pred_check_branch
          %682 = sbr.rel (%p680) target = $region64
        $region63: #{tpu_custom_call.1} parent=55 // pred_region
          %s683 = smul.u32 16, %s26
          %p684 = scmp.lt.s32.totalorder %s683, 31
          %s685 = scalar_select %p684, %s683, 31
          %s686 = smul.addr %s685, 8
          %s687 = scalar_lea.vmem %s4, %s686
        $region64: #{tpu_custom_call.1} parent=55 // pred_fallthru
          _
      $region56: #{tpu_custom_call.1} parent=5 // pred_fallthru
        _
    $region6: #{tpu_custom_call.1} parent=1 // loop_footer
      %s24 = sadd.s32 1, %s20
    $region7: #{tpu_custom_call.1} parent=1 // loop_footer_branch
      %19 = sbr.rel target = $region3
    $region8: #{tpu_custom_call.1} parent=1 // loop_exit
      _
    %688 = vsyncpa [#allocation3], 1
    %s689 = scalar_lea.sflag [#allocation3], 1
    %690 = vsyncpa %s689, 1
    %691 = vsyncpa [#allocation6], 1
    %s692 = scalar_lea.sflag [#allocation6], 1
    %693 = vsyncpa %s692, 1
    %694 = vsyncpa [#allocation4], 1
    %s695 = scalar_lea.sflag [#allocation4], 1
    %696 = vsyncpa %s695, 1

</llo_original>
